<compile_context>
chip_gen: v7x
topology: tpu7x:2x2x1
jax: 0.10.0
libtpu: 0.0.40
codegen_flags: <defaults>
</compile_context>

<pallas_src>
import functools

import jax
import jax.numpy as jnp
from jax import lax
from jax.experimental import pallas as pl
from jax.experimental.pallas import tpu as pltpu


def _round_up(x, m):
    return ((x + m - 1) // m) * m


def _sdpa_kernel(*refs, temperature, has_bias, return_attn):
    idx = 0
    q_ref = refs[idx]; idx += 1
    k_ref = refs[idx]; idx += 1
    v_ref = refs[idx]; idx += 1
    bias_ref = None
    if has_bias:
        bias_ref = refs[idx]; idx += 1
    out_ref = refs[idx]; idx += 1
    attn_ref = refs[idx] if return_attn else None

    q = q_ref[...]            # (tq, Dk)  native dtype
    k = k_ref[...]            # (Lk, Dk)
    v = v_ref[...]            # (Lk, Dv)

    # scores = q @ k^T (contract last dims of both operands -> no XLU
    # transpose, native-dtype MXU feed, f32 accumulation), then scale in f32.
    scores = lax.dot_general(
        q, k,
        dimension_numbers=(((1,), (1,)), ((), ())),
        preferred_element_type=jnp.float32)            # (tq, Lk) f32
    scores = scores * jnp.float32(1.0 / temperature)

    if has_bias:
        # Additive f32 bias (0 where kept, -1e9 where masked), broadcast
        # in-register from its small un-broadcast block.
        scores = scores + bias_ref[...]

    # Numerically stable softmax; the (tq,1) denominator reciprocal is exact
    # (essentially free on that tiny column) for parity with PyTorch.
    s_max = jnp.max(scores, axis=-1, keepdims=True)
    e = jnp.exp(scores - s_max)
    denom = jnp.sum(e, axis=-1, keepdims=True)
    p = e * pl.reciprocal(denom, approx=False)          # (tq, Lk) f32

    # Cast once, reuse for both the attn writeback and the p@v matmul.
    p_lo = p.astype(v.dtype)
    if return_attn:
        attn_ref[...] = p_lo.astype(attn_ref.dtype)
    out_ref[...] = jnp.dot(p_lo, v,
                           preferred_element_type=jnp.float32
                           ).astype(out_ref.dtype)


def scaled_dot_product_attention(q, k, v, temperature, mask=None,
                                 return_attn=True):
    """q:(B,H,Lq,Dk) k:(B,H,Lk,Dk) v:(B,H,Lk,Dv)
    mask: broadcastable to (B,H,Lq,Lk) or None (kept un-broadcast).
    Returns (out, attn) (attn is None when return_attn=False)."""
    B, H, Lq, Dk = q.shape
    Lk = k.shape[2]
    Dv = v.shape[3]
    in_dtype = q.dtype
    itemsize = jnp.dtype(in_dtype).itemsize

    # ---- mask -> small additive f32 bias (never broadcast in HBM) ----------
    has_mask = mask is not None
    if has_mask:
        m = jnp.asarray(mask)
        while m.ndim < 4:
            m = m[None]
        mB, mH, mLq, mLk = m.shape
        assert (mB in (1, B) and mH in (1, H) and mLq in (1, Lq)
                and mLk in (1, Lk)), "mask must be broadcastable to (B,H,Lq,Lk)"
        bias = jnp.where(m == 0, jnp.float32(-1000000000.0), jnp.float32(0.0))
    else:
        bias = None
        mB = mH = mLq = mLk = 1

    # ---- VMEM-aware q-tile selection ----------------------------------------
    def footprint(tq):
        fp = 2 * tq * Dk * itemsize                       # q block (dbl-buffered)
        fp += 2 * Lk * Dk * itemsize                      # K block
        fp += 2 * Lk * Dv * itemsize                      # V block
        if has_mask:
            fp += 2 * (tq if mLq != 1 else 1) * mLk * 4   # bias block
        fp += 2 * tq * Dv * itemsize                      # out block
        if return_attn:
            fp += 2 * tq * Lk * itemsize                  # attn block
        fp += 3 * tq * Lk * 4                             # f32 scores/e/p temps
        return fp

    budget = 30 * 1024 * 1024   # conservative: fits v7x 64 MiB physical VMEM
    tq = 8
    for cand in (512, 256, 128, 64, 32, 16, 8):
        if footprint(cand) <= budget:
            tq = cand
            break
    tq = min(tq, _round_up(Lq, 8))       # don't tile wider than (padded) Lq
    Lq_pad = _round_up(Lq, tq)
    nq = Lq_pad // tq

    # Pad the query axis so every block is full (padded rows are sliced off).
    if Lq_pad != Lq:
        pad = Lq_pad - Lq
        q = jnp.pad(q, ((0, 0), (0, 0), (0, pad), (0, 0)))
        if has_mask and mLq != 1:
            bias = jnp.pad(bias, ((0, 0), (0, 0), (0, pad), (0, 0)))
            mLq = Lq_pad

    sq = pl.Squeezed()
    grid = (B, H, nq)

    in_specs = [
        pl.BlockSpec((sq, sq, tq, Dk), lambda b, h, i: (b, h, i, 0)),
        # K / V index maps do not depend on the q-tile index -> the same block
        # is revisited across the innermost grid axis without re-DMA.
        pl.BlockSpec((sq, sq, Lk, Dk), lambda b, h, i: (b, h, 0, 0)),
        pl.BlockSpec((sq, sq, Lk, Dv), lambda b, h, i: (b, h, 0, 0)),
    ]
    inputs = [q, k, v]

    if has_mask:
        b_blk_q = tq if mLq != 1 else 1

        def bias_map(b, h, i, _mB=mB, _mH=mH, _mLq=mLq):
            return (b if _mB != 1 else 0,
                    h if _mH != 1 else 0,
                    i if _mLq != 1 else 0,
                    0)

        in_specs.append(pl.BlockSpec((sq, sq, b_blk_q, mLk), bias_map))
        inputs.append(bias)

    out_block = pl.BlockSpec((sq, sq, tq, Dv), lambda b, h, i: (b, h, i, 0))
    if return_attn:
        out_specs = [
            out_block,
            pl.BlockSpec((sq, sq, tq, Lk), lambda b, h, i: (b, h, i, 0)),
        ]
        out_shape = (
            jax.ShapeDtypeStruct((B, H, Lq_pad, Dv), in_dtype),
            # attn in the input dtype (matches PyTorch; halves writeback for bf16)
            jax.ShapeDtypeStruct((B, H, Lq_pad, Lk), in_dtype),
        )
    else:
        out_specs = out_block
        out_shape = jax.ShapeDtypeStruct((B, H, Lq_pad, Dv), in_dtype)

    vmem_limit = int(min(max(footprint(tq) * 13 // 10, 32 << 20), 60 << 20))

    kernel = functools.partial(_sdpa_kernel, temperature=float(temperature),
                               has_bias=has_mask, return_attn=return_attn)

    res = pl.pallas_call(
        kernel,
        out_shape=out_shape,
        grid_spec=pltpu.PrefetchScalarGridSpec(
            num_scalar_prefetch=0,
            grid=grid,
            in_specs=in_specs,
            out_specs=out_specs,
        ),
        compiler_params=pltpu.CompilerParams(
            dimension_semantics=("parallel", "parallel", "parallel"),
            vmem_limit_bytes=vmem_limit),
    )(*inputs)

    if return_attn:
        out, attn = res
    else:
        out, attn = res, None

    if Lq_pad != Lq:
        out = out[:, :, :Lq, :]
        if attn is not None:
            attn = attn[:, :, :Lq, :]
    return out, attn


def _reference(q, k, v, temperature, mask=None):
    scores = jnp.einsum("bhqd,bhkd->bhqk", q / temperature, k)
    if mask is not None:
        scores = jnp.where(mask == 0, -1000000000.0, scores)
    attn = jax.nn.softmax(scores, axis=-1)
    out = jnp.einsum("bhqk,bhkd->bhqd", attn, v)
    return out, attn


if __name__ == "__main__":
    B, H, Lq, Lk, Dk, Dv = 2, 4, 8, 8, 16, 16
    temperature = float(Dk) ** 0.5

    key = jax.random.PRNGKey(0)
    kq, kk, kv, km = jax.random.split(key, 4)
    q = jax.random.normal(kq, (B, H, Lq, Dk), dtype=jnp.float32)
    k = jax.random.normal(kk, (B, H, Lk, Dk), dtype=jnp.float32)
    v = jax.random.normal(kv, (B, H, Lk, Dv), dtype=jnp.float32)
    # Padding mask in its small un-broadcast shape (B,1,1,Lk); guarantee at
    # least one unmasked key per row (all-masked rows are meaningless).
    mask = (jax.random.uniform(km, (B, 1, 1, Lk)) > 0.2).astype(jnp.int32)
    mask = mask.at[..., 0].set(1)

    out, attn = scaled_dot_product_attention(q, k, v, temperature, mask=mask)
    jax.block_until_ready((out, attn))
    ref_out, ref_attn = _reference(q, k, v, temperature, mask=mask)
    assert jnp.allclose(out, ref_out, atol=2e-3, rtol=2e-3), "output mismatch"
    assert jnp.allclose(attn, ref_attn.astype(attn.dtype),
                        atol=2e-3, rtol=2e-3), "attn mismatch"

    # No-mask path.
    out_nm, attn_nm = scaled_dot_product_attention(q, k, v, temperature)
    ref_out_nm, ref_attn_nm = _reference(q, k, v, temperature)
    assert jnp.allclose(out_nm, ref_out_nm, atol=2e-3, rtol=2e-3)
    assert jnp.allclose(attn_nm, ref_attn_nm.astype(attn_nm.dtype),
                        atol=2e-3, rtol=2e-3)

    # Awkward (non-multiple-of-8) Lq + full-Lq mask: exercises query padding.
    Lq2, Lk2 = 12, 24
    k2q, k2k, k2v, k2m = jax.random.split(jax.random.PRNGKey(1), 4)
    q2 = jax.random.normal(k2q, (B, H, Lq2, Dk), dtype=jnp.float32)
    k2 = jax.random.normal(k2k, (B, H, Lk2, Dk), dtype=jnp.float32)
    v2 = jax.random.normal(k2v, (B, H, Lk2, Dv), dtype=jnp.float32)
    mask2 = (jax.random.uniform(k2m, (B, 1, Lq2, Lk2)) > 0.2).astype(jnp.int32)
    mask2 = mask2.at[..., 0].set(1)

    out2, attn2 = scaled_dot_product_attention(q2, k2, v2, temperature, mask=mask2)
    ref_out2, ref_attn2 = _reference(q2, k2, v2, temperature, mask=mask2)
    assert jnp.allclose(out2, ref_out2, atol=2e-3, rtol=2e-3)
    assert jnp.allclose(attn2, ref_attn2.astype(attn2.dtype), atol=2e-3, rtol=2e-3)

    # Fast path without the attention-matrix writeback.
    out3, attn3 = scaled_dot_product_attention(q2, k2, v2, temperature,
                                               mask=mask2, return_attn=False)
    jax.block_until_ready(out3)
    assert attn3 is None
    assert jnp.allclose(out3, ref_out2, atol=2e-3, rtol=2e-3)

    print("KERNEL_OK")
</pallas_src>

<mosaic_0001>
module attributes {stable_mosaic.version = 11 : i64} {
  func.func @_sdpa_kernel(%arg0: i32, %arg1: i32, %arg2: i32, %arg3: memref<1x1x8x16xf32, #tpu.memory_space<vmem>>, %arg4: memref<1x1x8x16xf32, #tpu.memory_space<vmem>>, %arg5: memref<1x1x8x16xf32, #tpu.memory_space<vmem>>, %arg6: memref<1x1x1x8xf32, #tpu.memory_space<vmem>>, %arg7: memref<1x1x8x16xf32, #tpu.memory_space<vmem>>, %arg8: memref<1x1x8x8xf32, #tpu.memory_space<vmem>>) attributes {dimension_semantics = [#tpu.dimension_semantics<parallel>, #tpu.dimension_semantics<parallel>, #tpu.dimension_semantics<parallel>], iteration_bounds = array<i64: 2, 4, 1>, scalar_prefetch = 0 : i64, scratch_operands = 0 : i64, tpu.core_type = #tpu.core_type<tc>, window_params = [{transform_indices = @transform_0, window_bounds = array<i64: 1, 1, 8, 16>}, {transform_indices = @transform_1, window_bounds = array<i64: 1, 1, 8, 16>}, {transform_indices = @transform_2, window_bounds = array<i64: 1, 1, 8, 16>}, {transform_indices = @transform_3, window_bounds = array<i64: 1, 1, 1, 8>}, {transform_indices = @transform_4, window_bounds = array<i64: 1, 1, 8, 16>}, {transform_indices = @transform_5, window_bounds = array<i64: 1, 1, 8, 8>}]} {
    %c0 = arith.constant 0 : index
    %c0_0 = arith.constant 0 : index
    %c0_1 = arith.constant 0 : index
    %c0_2 = arith.constant 0 : index
    %0 = vector.load %arg3[%c0, %c0_0, %c0_1, %c0_2] : memref<1x1x8x16xf32, #tpu.memory_space<vmem>>, vector<1x1x8x16xf32>
    %1 = vector.shape_cast %0 : vector<1x1x8x16xf32> to vector<8x16xf32>
    %c0_3 = arith.constant 0 : index
    %c0_4 = arith.constant 0 : index
    %c0_5 = arith.constant 0 : index
    %c0_6 = arith.constant 0 : index
    %2 = vector.load %arg4[%c0_3, %c0_4, %c0_5, %c0_6] : memref<1x1x8x16xf32, #tpu.memory_space<vmem>>, vector<1x1x8x16xf32>
    %3 = vector.shape_cast %2 : vector<1x1x8x16xf32> to vector<8x16xf32>
    %c0_7 = arith.constant 0 : index
    %c0_8 = arith.constant 0 : index
    %c0_9 = arith.constant 0 : index
    %c0_10 = arith.constant 0 : index
    %4 = vector.load %arg5[%c0_7, %c0_8, %c0_9, %c0_10] : memref<1x1x8x16xf32, #tpu.memory_space<vmem>>, vector<1x1x8x16xf32>
    %5 = vector.shape_cast %4 : vector<1x1x8x16xf32> to vector<8x16xf32>
    %cst = arith.constant dense<0.000000e+00> : vector<8x8xf32>
    %6 = tpu.matmul %1, %3, %cst {dimension_numbers = #tpu.dot_dimension_numbers<[1], [1], [0], [0], [0, 0, 1, 0], [], []>} : vector<8x16xf32>, vector<8x16xf32>, vector<8x8xf32> -> vector<8x8xf32>
    %cst_11 = arith.constant 2.500000e-01 : f32
    %7 = vector.broadcast %cst_11 : f32 to vector<8x8xf32>
    %8 = arith.mulf %6, %7 : vector<8x8xf32>
    %c0_12 = arith.constant 0 : index
    %c0_13 = arith.constant 0 : index
    %c0_14 = arith.constant 0 : index
    %c0_15 = arith.constant 0 : index
    %9 = vector.load %arg6[%c0_12, %c0_13, %c0_14, %c0_15] : memref<1x1x1x8xf32, #tpu.memory_space<vmem>>, vector<1x1x1x8xf32>
    %10 = vector.shape_cast %9 : vector<1x1x1x8xf32> to vector<1x8xf32>
    %11 = vector.broadcast %10 : vector<1x8xf32> to vector<8x8xf32>
    %12 = arith.addf %8, %11 : vector<8x8xf32>
    %cst_16 = arith.constant dense<0xFF800000> : vector<8xf32>
    %13 = vector.multi_reduction <maximumf>, %12, %cst_16 [1] : vector<8x8xf32> to vector<8xf32>
    %14 = vector.shape_cast %13 : vector<8xf32> to vector<8x1xf32>
    %15 = vector.broadcast %14 : vector<8x1xf32> to vector<8x8xf32>
    %16 = arith.subf %12, %15 : vector<8x8xf32>
    %17 = math.exp %16 : vector<8x8xf32>
    %cst_17 = arith.constant dense<0.000000e+00> : vector<8xf32>
    %18 = vector.multi_reduction <add>, %17, %cst_17 [1] : vector<8x8xf32> to vector<8xf32>
    %19 = vector.shape_cast %18 : vector<8xf32> to vector<8x1xf32>
    %20 = tpu.reciprocal %19 : vector<8x1xf32> -> vector<8x1xf32>
    %21 = vector.broadcast %20 : vector<8x1xf32> to vector<8x8xf32>
    %22 = arith.mulf %17, %21 : vector<8x8xf32>
    %c0_18 = arith.constant 0 : index
    %c0_19 = arith.constant 0 : index
    %c0_20 = arith.constant 0 : index
    %c0_21 = arith.constant 0 : index
    %23 = vector.load %arg8[%c0_18, %c0_19, %c0_20, %c0_21] : memref<1x1x8x8xf32, #tpu.memory_space<vmem>>, vector<1x1x8x8xf32>
    %24 = vector.shape_cast %23 : vector<1x1x8x8xf32> to vector<8x8xf32>
    %25 = vector.shape_cast %22 : vector<8x8xf32> to vector<1x1x8x8xf32>
    tpu.vector_store %arg8[%c0_18, %c0_19, %c0_20, %c0_21], %25 {strides = array<i32>} : memref<1x1x8x8xf32, #tpu.memory_space<vmem>>, vector<1x1x8x8xf32>,
    %cst_22 = arith.constant dense<0.000000e+00> : vector<8x16xf32>
    %26 = tpu.matmul %22, %5, %cst_22 {dimension_numbers = #tpu.dot_dimension_numbers<[1], [0], [0], [1], [0, 0, 1, 1], [], []>} : vector<8x8xf32>, vector<8x16xf32>, vector<8x16xf32> -> vector<8x16xf32>
    %c0_23 = arith.constant 0 : index
    %c0_24 = arith.constant 0 : index
    %c0_25 = arith.constant 0 : index
    %c0_26 = arith.constant 0 : index
    %27 = vector.load %arg7[%c0_23, %c0_24, %c0_25, %c0_26] : memref<1x1x8x16xf32, #tpu.memory_space<vmem>>, vector<1x1x8x16xf32>
    %28 = vector.shape_cast %27 : vector<1x1x8x16xf32> to vector<8x16xf32>
    %29 = vector.shape_cast %26 : vector<8x16xf32> to vector<1x1x8x16xf32>
    tpu.vector_store %arg7[%c0_23, %c0_24, %c0_25, %c0_26], %29 {strides = array<i32>} : memref<1x1x8x16xf32, #tpu.memory_space<vmem>>, vector<1x1x8x16xf32>,
    return
  }
  func.func @transform_0(%arg0: i32, %arg1: i32, %arg2: i32) -> (i32, i32, i32, i32) {
    %c0_i32 = arith.constant 0 : i32
    %c0_i32_0 = arith.constant 0 : i32
    return %arg0, %arg1, %arg2, %c0_i32 : i32, i32, i32, i32
  }
  func.func @transform_1(%arg0: i32, %arg1: i32, %arg2: i32) -> (i32, i32, i32, i32) {
    %c0_i32 = arith.constant 0 : i32
    %c0_i32_0 = arith.constant 0 : i32
    %c0_i32_1 = arith.constant 0 : i32
    return %arg0, %arg1, %c0_i32, %c0_i32_0 : i32, i32, i32, i32
  }
  func.func @transform_2(%arg0: i32, %arg1: i32, %arg2: i32) -> (i32, i32, i32, i32) {
    %c0_i32 = arith.constant 0 : i32
    %c0_i32_0 = arith.constant 0 : i32
    %c0_i32_1 = arith.constant 0 : i32
    return %arg0, %arg1, %c0_i32, %c0_i32_0 : i32, i32, i32, i32
  }
  func.func @transform_3(%arg0: i32, %arg1: i32, %arg2: i32) -> (i32, i32, i32, i32) {
    %c0_i32 = arith.constant 0 : i32
    %c0_i32_0 = arith.constant 0 : i32
    %c0_i32_1 = arith.constant 0 : i32
    %c0_i32_2 = arith.constant 0 : i32
    return %arg0, %c0_i32, %c0_i32_0, %c0_i32_1 : i32, i32, i32, i32
  }
  func.func @transform_4(%arg0: i32, %arg1: i32, %arg2: i32) -> (i32, i32, i32, i32) {
    %c0_i32 = arith.constant 0 : i32
    %c0_i32_0 = arith.constant 0 : i32
    return %arg0, %arg1, %arg2, %c0_i32 : i32, i32, i32, i32
  }
  func.func @transform_5(%arg0: i32, %arg1: i32, %arg2: i32) -> (i32, i32, i32, i32) {
    %c0_i32 = arith.constant 0 : i32
    %c0_i32_0 = arith.constant 0 : i32
    return %arg0, %arg1, %arg2, %c0_i32 : i32, i32, i32, i32
  }
}

</mosaic_0001>

<llo_original>
// kernel: tpu_custom_call.1
$region0: #{tpu_custom_call.1}
  #allocation0 [shape = 'u32[]', space=smem, size = 0x4, offset = 0x4, fixed_abs, tag = 'smem constant byte address 0x4 - core index']
  #allocation1 [shape = 'u32[144,128]{1,0:T(1,128)}', space=vmem, size = 0x12000, scoped, tag = 'internal scratch']
  %s0 = inlined_call_operand.hbm [shape: f32[2,4,8,16], index: 0, kind: input, shape index: {}]
  %s1 = inlined_call_operand.hbm [shape: f32[2,4,8,16], index: 1, kind: input, shape index: {}]
  %s2 = inlined_call_operand.hbm [shape: f32[2,4,8,16], index: 2, kind: input, shape index: {}]
  %s3 = inlined_call_operand.vmem [shape: f32[2,1,1,8], index: 3, kind: input, shape index: {}]
  %s4 = inlined_call_operand.hbm [shape: f32[2,4,8,16], index: 4, kind: output, shape index: {0}]
  %s5 = inlined_call_operand.hbm [shape: f32[2,4,8,8], index: 5, kind: output, shape index: {1}]
  %6 = xla_tuple %s4, %s5
  %s7 = sld [smem:[#allocation0]]
  $region69: #{tpu_custom_call.1} parent=0
    _
  %s9 = ssub.s32 1, %s7
  %s10 = scalar_select 0, %s9, %s7
  $region1: #{tpu_custom_call.1} parent=0
    #allocation2 [shape = 'u8[8192]{0}', space=vmem, size = 0x2000, scoped, tag = 'input window, operand 0']
    #allocation3 [shape = 's32[2]{0}', space=sflag, size = 0x8, scoped, tag = 'scoped memory for tpu_custom_call.1']
    #allocation4 [shape = 's32[2]{0}', space=sflag, size = 0x8, scoped, tag = 'scoped memory for tpu_custom_call.1']
    #allocation5 [shape = 'u8[8192]{0}', space=vmem, size = 0x2000, scoped, tag = 'input window, operand 1']
    #allocation6 [shape = 's32[2]{0}', space=sflag, size = 0x8, scoped, tag = 'scoped memory for tpu_custom_call.1']
    #allocation7 [shape = 'u8[8192]{0}', space=vmem, size = 0x2000, scoped, tag = 'input window, operand 2']
    #allocation8 [shape = 'u8[8192]{0}', space=vmem, size = 0x2000, scoped, tag = 'output window, operand 0']
    #allocation9 [shape = 'u8[8192]{0}', space=vmem, size = 0x2000, scoped, tag = 'output window, operand 1']
    #allocation10 [shape = 's32[2]{0}', space=sflag, size = 0x8, scoped, tag = 'scoped memory for tpu_custom_call.1']
    %11 = vsyncpa [#allocation3], 0
    %s12 = scalar_lea.sflag [#allocation3], 1
    %13 = vsyncpa %s12, 0
    %14 = vsyncpa [#allocation6], 0
    %s15 = scalar_lea.sflag [#allocation6], 1
    %16 = vsyncpa %s15, 0
    %17 = vsyncpa [#allocation4], 0
    %s18 = scalar_lea.sflag [#allocation4], 1
    %19 = vsyncpa %s18, 0
    %20 = vsyncpa [#allocation10], 0
    %s21 = scalar_lea.sflag [#allocation10], 1
    %22 = vsyncpa %s21, 0
    loop: start=0, step=1, limit=10
    $region2: #{tpu_custom_call.1} parent=1 // loop_pre_header
      _
    $region3: #{tpu_custom_call.1} parent=1 // loop_header
      %s24 = sphi 0, %s28
      %p25 = scmp.ge.s32.totalorder %s24, 10
      %s31 = sphi 0, %s50
      %s32 = sphi 0, %s46
      %s33 = sphi 0, %s42
      %s34 = sphi 0, %s31
      %s35 = sphi 0, %s32
      %s36 = sphi 0, %s33
      %s37 = sphi 0, %s34
      %s38 = sphi 0, %s35
      %s39 = sphi 0, %s36
      %s57 = sphi 0, %s59
      %s60 = sphi 0, %s57
      %s61 = sphi 0, %s60
      %s77 = sphi 0, %s61
      %s85 = sphi 0, %s87
      %s88 = sphi 0, %s85
      %s89 = sphi 0, %s88
      %s105 = sphi 0, %s89
      %s113 = sphi 0, %s115
      %s116 = sphi 0, %s113
      %s117 = sphi 0, %s116
      %s133 = sphi 0, %s117
      %s139 = sphi 0, %s141
      %s142 = sphi 0, %s139
      %s143 = sphi 0, %s142
      %s159 = sphi 0, %s143
      %s169 = sphi 0, %s171
      %s172 = sphi 0, %s169
      %s173 = sphi 0, %s172
      %s189 = sphi 0, %s173
      %s199 = sphi 0, %s201
      %s202 = sphi 0, %s199
      %s203 = sphi 0, %s202
      %s219 = sphi 0, %s203
    $region4: #{tpu_custom_call.1} parent=1 // loop_header_branch
      %27 = sbr.rel (%p25) target = $region8
    $region5: #{tpu_custom_call.1} parent=1 // loop_body
      %s29 = ssub.s32 %s24, 1
      %s30 = ssub.s32 %s24, 2
      %s40 = sadd.s32 1, %s33
      %p41 = scmp.ge.s32.totalorder %s40, 1
      %s42 = scalar_select %p41, 0, %s40
      %s43 = sadd.s32 1, %s32
      %s44 = scalar_select %p41, %s43, %s32
      %p45 = scmp.ge.s32.totalorder %s44, 4
      %s46 = scalar_select %p45, 0, %s44
      %s47 = sadd.s32 1, %s31
      %s48 = scalar_select %p45, %s47, %s31
      %p49 = scmp.ge.s32.totalorder %s48, 2
      %s50 = scalar_select %p49, 0, %s48
      %s51 = ssub.s32 %s31, %s50
      %s52 = ssub.s32 %s32, %s46
      %s53 = sor.u32 %s51, %s52
      %s54 = ssub.s32 %s33, %s42
      %s55 = sor.u32 %s53, %s54
      %p56 = scmp.eq.s32.totalorder %s55, 0
      %s58 = sadd.s32 %s57, 1
      %s59 = scalar_select %p56, %s57, %s58
      %p62 = pneg %p56
      %p63 = scmp.eq.s32.totalorder %s24, 7
      %p64 = por %p62, %p63
      %p65 = scmp.ne.s32.totalorder %s57, %s60
      %p66 = scmp.eq.s32.totalorder %s24, 0
      %p67 = por %p65, %p66
      %p68 = scmp.ne.s32.totalorder %s57, %s60
      %p69 = scmp.eq.s32.totalorder %s29, 7
      %p70 = por %p68, %p69
      %p71 = scmp.ne.s32.totalorder %s60, %s61
      %p72 = scmp.eq.s32.totalorder %s29, 0
      %p73 = por %p71, %p72
      %p74 = scmp.ne.s32.totalorder %s60, %s61
      %p75 = scmp.eq.s32.totalorder %s30, 7
      %p76 = por %p74, %p75
      %p78 = scmp.ne.s32.totalorder %s61, %s77
      %p79 = scmp.eq.s32.totalorder %s30, 0
      %p80 = por %p78, %p79
      %s81 = ssub.s32 %s31, %s50
      %s82 = ssub.s32 %s32, %s46
      %s83 = sor.u32 %s81, %s82
      %p84 = scmp.eq.s32.totalorder %s83, 0
      %s86 = sadd.s32 %s85, 1
      %s87 = scalar_select %p84, %s85, %s86
      %p90 = pneg %p84
      %p91 = scmp.eq.s32.totalorder %s24, 7
      %p92 = por %p90, %p91
      %p93 = scmp.ne.s32.totalorder %s85, %s88
      %p94 = scmp.eq.s32.totalorder %s24, 0
      %p95 = por %p93, %p94
      %p96 = scmp.ne.s32.totalorder %s85, %s88
      %p97 = scmp.eq.s32.totalorder %s29, 7
      %p98 = por %p96, %p97
      %p99 = scmp.ne.s32.totalorder %s88, %s89
      %p100 = scmp.eq.s32.totalorder %s29, 0
      %p101 = por %p99, %p100
      %p102 = scmp.ne.s32.totalorder %s88, %s89
      %p103 = scmp.eq.s32.totalorder %s30, 7
      %p104 = por %p102, %p103
      %p106 = scmp.ne.s32.totalorder %s89, %s105
      %p107 = scmp.eq.s32.totalorder %s30, 0
      %p108 = por %p106, %p107
      %s109 = ssub.s32 %s31, %s50
      %s110 = ssub.s32 %s32, %s46
      %s111 = sor.u32 %s109, %s110
      %p112 = scmp.eq.s32.totalorder %s111, 0
      %s114 = sadd.s32 %s113, 1
      %s115 = scalar_select %p112, %s113, %s114
      %p118 = pneg %p112
      %p119 = scmp.eq.s32.totalorder %s24, 7
      %p120 = por %p118, %p119
      %p121 = scmp.ne.s32.totalorder %s113, %s116
      %p122 = scmp.eq.s32.totalorder %s24, 0
      %p123 = por %p121, %p122
      %p124 = scmp.ne.s32.totalorder %s113, %s116
      %p125 = scmp.eq.s32.totalorder %s29, 7
      %p126 = por %p124, %p125
      %p127 = scmp.ne.s32.totalorder %s116, %s117
      %p128 = scmp.eq.s32.totalorder %s29, 0
      %p129 = por %p127, %p128
      %p130 = scmp.ne.s32.totalorder %s116, %s117
      %p131 = scmp.eq.s32.totalorder %s30, 7
      %p132 = por %p130, %p131
      %p134 = scmp.ne.s32.totalorder %s117, %s133
      %p135 = scmp.eq.s32.totalorder %s30, 0
      %p136 = por %p134, %p135
      %s137 = ssub.s32 %s31, %s50
      %p138 = scmp.eq.s32.totalorder %s137, 0
      %s140 = sadd.s32 %s139, 1
      %s141 = scalar_select %p138, %s139, %s140
      %p144 = pneg %p138
      %p145 = scmp.eq.s32.totalorder %s24, 7
      %p146 = por %p144, %p145
      %p147 = scmp.ne.s32.totalorder %s139, %s142
      %p148 = scmp.eq.s32.totalorder %s24, 0
      %p149 = por %p147, %p148
      %p150 = scmp.ne.s32.totalorder %s139, %s142
      %p151 = scmp.eq.s32.totalorder %s29, 7
      %p152 = por %p150, %p151
      %p153 = scmp.ne.s32.totalorder %s142, %s143
      %p154 = scmp.eq.s32.totalorder %s29, 0
      %p155 = por %p153, %p154
      %p156 = scmp.ne.s32.totalorder %s142, %s143
      %p157 = scmp.eq.s32.totalorder %s30, 7
      %p158 = por %p156, %p157
      %p160 = scmp.ne.s32.totalorder %s143, %s159
      %p161 = scmp.eq.s32.totalorder %s30, 0
      %p162 = por %p160, %p161
      %s163 = ssub.s32 %s31, %s50
      %s164 = ssub.s32 %s32, %s46
      %s165 = sor.u32 %s163, %s164
      %s166 = ssub.s32 %s33, %s42
      %s167 = sor.u32 %s165, %s166
      %p168 = scmp.eq.s32.totalorder %s167, 0
      %s170 = sadd.s32 %s169, 1
      %s171 = scalar_select %p168, %s169, %s170
      %p174 = pneg %p168
      %p175 = scmp.eq.s32.totalorder %s24, 7
      %p176 = por %p174, %p175
      %p177 = scmp.ne.s32.totalorder %s169, %s172
      %p178 = scmp.eq.s32.totalorder %s24, 0
      %p179 = por %p177, %p178
      %p180 = scmp.ne.s32.totalorder %s169, %s172
      %p181 = scmp.eq.s32.totalorder %s29, 7
      %p182 = por %p180, %p181
      %p183 = scmp.ne.s32.totalorder %s172, %s173
      %p184 = scmp.eq.s32.totalorder %s29, 0
      %p185 = por %p183, %p184
      %p186 = scmp.ne.s32.totalorder %s172, %s173
      %p187 = scmp.eq.s32.totalorder %s30, 7
      %p188 = por %p186, %p187
      %p190 = scmp.ne.s32.totalorder %s173, %s189
      %p191 = scmp.eq.s32.totalorder %s30, 0
      %p192 = por %p190, %p191
      %s193 = ssub.s32 %s31, %s50
      %s194 = ssub.s32 %s32, %s46
      %s195 = sor.u32 %s193, %s194
      %s196 = ssub.s32 %s33, %s42
      %s197 = sor.u32 %s195, %s196
      %p198 = scmp.eq.s32.totalorder %s197, 0
      %s200 = sadd.s32 %s199, 1
      %s201 = scalar_select %p198, %s199, %s200
      %p204 = pneg %p198
      %p205 = scmp.eq.s32.totalorder %s24, 7
      %p206 = por %p204, %p205
      %p207 = scmp.ne.s32.totalorder %s199, %s202
      %p208 = scmp.eq.s32.totalorder %s24, 0
      %p209 = por %p207, %p208
      %p210 = scmp.ne.s32.totalorder %s199, %s202
      %p211 = scmp.eq.s32.totalorder %s29, 7
      %p212 = por %p210, %p211
      %p213 = scmp.ne.s32.totalorder %s202, %s203
      %p214 = scmp.eq.s32.totalorder %s29, 0
      %p215 = por %p213, %p214
      %p216 = scmp.ne.s32.totalorder %s202, %s203
      %p217 = scmp.eq.s32.totalorder %s30, 7
      %p218 = por %p216, %p217
      %p220 = scmp.ne.s32.totalorder %s203, %s219
      %p221 = scmp.eq.s32.totalorder %s30, 0
      %p222 = por %p220, %p221
      %p223 = scmp.le.s32.totalorder 1, %s24
      %p224 = scmp.lt.s32.totalorder %s24, 9
      %p225 = pnand %p223, %p224
      %p226 = pneg %p225
      // Predicated region
      $region9: #{tpu_custom_call.1} parent=5 // pred_check
        _
      $region10: #{tpu_custom_call.1} parent=5 // pred_check_branch
        %228 = sbr.rel (%p225) target = $region12
      $region11: #{tpu_custom_call.1} parent=5 // pred_region
        %s229 = ssub.s32 %s24, 1
      $region12: #{tpu_custom_call.1} parent=5 // pred_fallthru
        _
      %p230 = scmp.lt.s32.totalorder %s24, 8
      // Predicated region
      $region13: #{tpu_custom_call.1} parent=5 // pred_check
        %p231 = pneg %p230
      $region14: #{tpu_custom_call.1} parent=5 // pred_check_branch
        %233 = sbr.rel (%p231) target = $region16
      $region15: #{tpu_custom_call.1} parent=5 // pred_region
        // Predicated region
        $region17: #{tpu_custom_call.1} parent=15 // pred_check
          %p234 = pneg %p67
        $region18: #{tpu_custom_call.1} parent=15 // pred_check_branch
          %236 = sbr.rel (%p234) target = $region20
        $region19: #{tpu_custom_call.1} parent=15 // pred_region
          %s237 = sand.u32 %s57, 1
          %s238 = scalar_lea.sflag [#allocation3], %s237
          %s239 = sand.u32 %s57, 1
          %s240 = smul.addr %s239, 8
          %s241 = scalar_lea.vmem [#allocation2], %s240
          %s243 = ssub.s32 128, 128
          %244 = vsyncadd %s238, %s243
          %s245 = sadd.s32 %s33, %s32
          %s246 = smul.addr %s31, 4
          %s247 = sadd.s32 %s245, %s246
          %s248 = smul.addr %s247, 128
          %s249 = scalar_lea.hbm %s0, %s248
          %s251 = sshll.u32 %s241, 4
          %s252 = int_to_ptr.vmem [resolvable:$true] %s251
          %254 = dma.hbm_to_vmem [thread:$0]  %s249, 128, %s252, %s238
        $region20: #{tpu_custom_call.1} parent=15 // pred_fallthru
          _
        // Predicated region
        $region21: #{tpu_custom_call.1} parent=15 // pred_check
          %p255 = pneg %p95
        $region22: #{tpu_custom_call.1} parent=15 // pred_check_branch
          %257 = sbr.rel (%p255) target = $region24
        $region23: #{tpu_custom_call.1} parent=15 // pred_region
          %s258 = sand.u32 %s24, 1
          %s259 = scalar_lea.sflag [#allocation6], %s258
          %s260 = sand.u32 %s85, 1
          %s261 = smul.addr %s260, 8
          %s262 = scalar_lea.vmem [#allocation5], %s261
          %s264 = ssub.s32 128, 128
          %265 = vsyncadd %s259, %s264
          %s266 = smul.addr %s31, 4
          %s267 = sadd.s32 %s32, %s266
          %s268 = smul.addr %s267, 128
          %s269 = scalar_lea.hbm %s1, %s268
          %s271 = sshll.u32 %s262, 4
          %s272 = int_to_ptr.vmem [resolvable:$true] %s271
          %274 = dma.hbm_to_vmem [thread:$0]  %s269, 128, %s272, %s259
        $region24: #{tpu_custom_call.1} parent=15 // pred_fallthru
          _
        // Predicated region
        $region25: #{tpu_custom_call.1} parent=15 // pred_check
          %p275 = pneg %p123
        $region26: #{tpu_custom_call.1} parent=15 // pred_check_branch
          %277 = sbr.rel (%p275) target = $region28
        $region27: #{tpu_custom_call.1} parent=15 // pred_region
          %s278 = sand.u32 %s24, 1
          %s279 = scalar_lea.sflag [#allocation6], %s278
          %s280 = sand.u32 %s113, 1
          %s281 = smul.addr %s280, 8
          %s282 = scalar_lea.vmem [#allocation7], %s281
          %s284 = ssub.s32 128, 128
          %285 = vsyncadd %s279, %s284
          %s286 = smul.addr %s31, 4
          %s287 = sadd.s32 %s32, %s286
          %s288 = smul.addr %s287, 128
          %s289 = scalar_lea.hbm %s2, %s288
          %s291 = sshll.u32 %s282, 4
          %s292 = int_to_ptr.vmem [resolvable:$true] %s291
          %294 = dma.hbm_to_vmem [thread:$0]  %s289, 128, %s292, %s279
        $region28: #{tpu_custom_call.1} parent=15 // pred_fallthru
          _
        // Predicated region
        $region29: #{tpu_custom_call.1} parent=15 // pred_check
          %p295 = pneg %p149
        $region30: #{tpu_custom_call.1} parent=15 // pred_check_branch
          %297 = sbr.rel (%p295) target = $region32
        $region31: #{tpu_custom_call.1} parent=15 // pred_region
          %p298 = scmp.lt.s32.totalorder %s31, 1
          %s299 = scalar_select %p298, %s31, 1
          %s300 = scalar_lea.vmem %s3, %s299
        $region32: #{tpu_custom_call.1} parent=15 // pred_fallthru
          _
      $region16: #{tpu_custom_call.1} parent=5 // pred_fallthru
        _
      %p301 = scmp.le.s32.totalorder 1, %s24
      %p302 = scmp.lt.s32.totalorder %s24, 9
      %p303 = pnand %p301, %p302
      %p304 = pneg %p303
      // Predicated region
      $region33: #{tpu_custom_call.1} parent=5 // pred_check
        _
      $region34: #{tpu_custom_call.1} parent=5 // pred_check_branch
        %306 = sbr.rel (%p303) target = $region36
      $region35: #{tpu_custom_call.1} parent=5 // pred_region
        %s307 = ssub.s32 %s24, 1
        %s308 = sand.u32 %s60, 1
        %s309 = scalar_lea.sflag [#allocation3], %s308
        %s310 = sand.u32 %s60, 1
        %s311 = smul.addr %s310, 8
        %s312 = scalar_lea.vmem [#allocation2], %s311
        // Predicated region
        $region37: #{tpu_custom_call.1} parent=35 // pred_check
          %p313 = pneg %p73
        $region38: #{tpu_custom_call.1} parent=35 // pred_check_branch
          %315 = sbr.rel (%p313) target = $region40
        $region39: #{tpu_custom_call.1} parent=35 // pred_region
          %316 = dma.done %s309, 128
        $region40: #{tpu_custom_call.1} parent=35 // pred_fallthru
          _
        %s317 = sand.u32 %s29, 1
        %s318 = scalar_lea.sflag [#allocation6], %s317
        %s319 = sand.u32 %s88, 1
        %s320 = smul.addr %s319, 8
        %s321 = scalar_lea.vmem [#allocation5], %s320
        // Predicated region
        $region41: #{tpu_custom_call.1} parent=35 // pred_check
          %p322 = pneg %p101
        $region42: #{tpu_custom_call.1} parent=35 // pred_check_branch
          %324 = sbr.rel (%p322) target = $region44
        $region43: #{tpu_custom_call.1} parent=35 // pred_region
          %325 = dma.done %s318, 128
        $region44: #{tpu_custom_call.1} parent=35 // pred_fallthru
          _
        %s326 = sand.u32 %s29, 1
        %s327 = scalar_lea.sflag [#allocation6], %s326
        %s328 = sand.u32 %s116, 1
        %s329 = smul.addr %s328, 8
        %s330 = scalar_lea.vmem [#allocation7], %s329
        // Predicated region
        $region45: #{tpu_custom_call.1} parent=35 // pred_check
          %p331 = pneg %p129
        $region46: #{tpu_custom_call.1} parent=35 // pred_check_branch
          %333 = sbr.rel (%p331) target = $region48
        $region47: #{tpu_custom_call.1} parent=35 // pred_region
          %334 = dma.done %s327, 128
        $region48: #{tpu_custom_call.1} parent=35 // pred_fallthru
          _
        %s335 = sand.u32 %s60, 1
        %s336 = scalar_lea.sflag [#allocation3], %s335
        %s337 = sand.u32 %s60, 1
        %s338 = smul.addr %s337, 8
        %s339 = scalar_lea.vmem [#allocation2], %s338
        %p340 = pneg %p73
        %p341 = pneg %p70
        %s342 = sand.u32 %s29, 1
        %s343 = scalar_lea.sflag [#allocation6], %s342
        %s344 = sand.u32 %s88, 1
        %s345 = smul.addr %s344, 8
        %s346 = scalar_lea.vmem [#allocation5], %s345
        %p347 = pneg %p101
        %p348 = pneg %p98
        %s349 = sand.u32 %s29, 1
        %s350 = scalar_lea.sflag [#allocation6], %s349
        %s351 = sand.u32 %s116, 1
        %s352 = smul.addr %s351, 8
        %s353 = scalar_lea.vmem [#allocation7], %s352
        %p354 = pneg %p129
        %p355 = pneg %p126
        %p356 = scmp.lt.s32.totalorder %s34, 1
        %s357 = scalar_select %p356, %s34, 1
        %s358 = scalar_lea.vmem %s3, %s357
        %p359 = pneg %p155
        %p360 = pneg %p152
        %p361 = pneg %p185
        %p362 = pneg %p182
        %s363 = sand.u32 %s172, 1
        %s364 = scalar_lea.sflag [#allocation4], %s363
        %s365 = sand.u32 %s172, 1
        %s366 = smul.addr %s365, 8
        %s367 = scalar_lea.vmem [#allocation8], %s366
        %p368 = pneg %p215
        %p369 = pneg %p212
        %s370 = sand.u32 %s202, 1
        %s371 = scalar_lea.sflag [#allocation10], %s370
        %s372 = sand.u32 %s202, 1
        %s373 = smul.addr %s372, 8
        %s374 = scalar_lea.vmem [#allocation9], %s373
        %p375 = scmp.lt.s32.totalorder %s34, 1
        %s376 = scalar_select %p375, %s34, 1
        %s377 = scalar_lea.vmem %s3, %s376
        %v378 = vld [vmem:[%s312] sm:$0xff]
        %v379 = vld [vmem:[%s321] sm:$0xff]
        %v380 = vld [vmem:[%s330] sm:$0xff]
        %vm381 = vcmask 130048
        %v383 = vsel %vm381, %v378, 0
        %v386 = vsel %vm381, %v379, 0
        %388 = vmatprep.subr.mxu0 0.0
        %389 = vmatpush1.xpose.msra.mxu0 %v386
        %390 = vmatprep.subr.mxu0 0.0
        %391 = vmatpush1.xpose.msra.mxu0 0.0
        %392 = vmatprep.subr.mxu0 0.0
        %393 = vmatpush1.xpose.msra.mxu0 0.0
        %394 = vmatprep.subr.mxu0 0.0
        %395 = vmatpush1.xpose.msra.mxu0 0.0
        %396 = vmatprep.subr.mxu0 0.0
        %397 = vmatpush1.xpose.msra.mxu0 0.0
        %398 = vmatprep.subr.mxu0 0.0
        %399 = vmatpush1.xpose.msra.mxu0 0.0
        %400 = vmatprep.subr.mxu0 0.0
        %401 = vmatpush1.xpose.msra.mxu0 0.0
        %402 = vmatprep.subr.mxu0 0.0
        %403 = vmatpush1.xpose.msra.mxu0 0.0
        %404 = vmatprep.subr.mxu0 0.0
        %405 = vmatpush1.xpose.msra.mxu0 0.0
        %406 = vmatprep.subr.mxu0 0.0
        %407 = vmatpush1.xpose.msra.mxu0 0.0
        %408 = vmatprep.subr.mxu0 0.0
        %409 = vmatpush1.xpose.msra.mxu0 0.0
        %410 = vmatprep.subr.mxu0 0.0
        %411 = vmatpush1.xpose.msra.mxu0 0.0
        %412 = vmatprep.subr.mxu0 0.0
        %413 = vmatpush1.xpose.msra.mxu0 0.0
        %414 = vmatprep.subr.mxu0 0.0
        %415 = vmatpush1.xpose.msra.mxu0 0.0
        %416 = vmatprep.subr.mxu0 0.0
        %417 = vmatpush1.xpose.msra.mxu0 0.0
        %418 = vmatprep.subr.mxu0 0.0
        %419 = vmatpush1.xpose.msra.mxu0 0.0
        %420 = vmatprep.subr.mxu0 0.0
        %421 = vmatpush1.xpose.msra.mxu0 0.0
        %422 = vmatprep.subr.mxu0 0.0
        %423 = vmatpush1.xpose.msra.mxu0 0.0
        %424 = vmatprep.subr.mxu0 0.0
        %425 = vmatpush1.xpose.msra.mxu0 0.0
        %426 = vmatprep.subr.mxu0 0.0
        %427 = vmatpush1.xpose.msra.mxu0 0.0
        %428 = vmatprep.subr.mxu0 0.0
        %429 = vmatpush1.xpose.msra.mxu0 0.0
        %430 = vmatprep.subr.mxu0 0.0
        %431 = vmatpush1.xpose.msra.mxu0 0.0
        %432 = vmatprep.subr.mxu0 0.0
        %433 = vmatpush1.xpose.msra.mxu0 0.0
        %434 = vmatprep.subr.mxu0 0.0
        %435 = vmatpush1.xpose.msra.mxu0 0.0
        %436 = vmatprep.subr.mxu0 0.0
        %437 = vmatpush1.xpose.msra.mxu0 0.0
        %438 = vmatprep.subr.mxu0 0.0
        %439 = vmatpush1.xpose.msra.mxu0 0.0
        %440 = vmatprep.subr.mxu0 0.0
        %441 = vmatpush1.xpose.msra.mxu0 0.0
        %442 = vmatprep.subr.mxu0 0.0
        %443 = vmatpush1.xpose.msra.mxu0 0.0
        %444 = vmatprep.subr.mxu0 0.0
        %445 = vmatpush1.xpose.msra.mxu0 0.0
        %446 = vmatprep.subr.mxu0 0.0
        %447 = vmatpush1.xpose.msra.mxu0 0.0
        %448 = vmatprep.subr.mxu0 0.0
        %449 = vmatpush1.xpose.msra.mxu0 0.0
        %450 = vmatprep.subr.mxu0 0.0
        %451 = vmatpush1.xpose.msra.mxu0 0.0
        %452 = vmatprep.mubr.f32.mxu0 0.0
        %453 = vmatmul.mubr.f32.gmra.mrb[0].mxu0 %v383
        %v454 = vpop.f32.mrb[0].mxu0
        %v455 = vadd.f32 0.0, %v454
        %v456 = vpop.f32.mrb[0].mxu0
        %457 = vdwg.mxu0
        %v458 = vmul.f32 %v455, 0.25
        %v459 = vld [vmem:[%s377] sm:$0x1]
        %v461 = vlaneseq
        %v462 = vshrl.u32 %v461, 7
        %v463 = vsub.s32 0, %v462
        %v464 = vrot.slane %v459, %v463
        %v466 = vadd.f32 %v458, %v464
        %vm467 = vcmask 64512
        %v468 = vsel %vm467, %v466, -inf
        %469 = vmax.xlane.f32.xlu0 %v468
        %v470 = vpop.xlane.xlu0 %469
        %v471 = vsub.f32 %v466, %v470
        %v472 = vmul.f32 %v471, 1.442695
        %v473 = vpow.pop %v472
        %v474 = vsel %vm467, %v473, 0.0
        %475 = vadd.xlane.f32.xlu0 %v474
        %v476 = vpop.xlane.xlu0 %475
        %v477 = vrcp.pop %v476
        %v478 = vmul.f32 %v473, %v477
        %479 = vst.msk [vmem:[%s374] sm:$0xff] %vm467, %v478
        %v481 = vsel %vm467, %v478, 0
        %483 = vmatprep.subr.mxu0 0.0
        %484 = vmatpush1.msra.mxu0 %v380
        %485 = vmatprep.subr.mxu0 0.0
        %486 = vmatpush1.msra.mxu0 0.0
        %487 = vmatprep.subr.mxu0 0.0
        %488 = vmatpush1.msra.mxu0 0.0
        %489 = vmatprep.subr.mxu0 0.0
        %490 = vmatpush1.msra.mxu0 0.0
        %491 = vmatprep.subr.mxu0 0.0
        %492 = vmatpush1.msra.mxu0 0.0
        %493 = vmatprep.subr.mxu0 0.0
        %494 = vmatpush1.msra.mxu0 0.0
        %495 = vmatprep.subr.mxu0 0.0
        %496 = vmatpush1.msra.mxu0 0.0
        %497 = vmatprep.subr.mxu0 0.0
        %498 = vmatpush1.msra.mxu0 0.0
        %499 = vmatprep.subr.mxu0 0.0
        %500 = vmatpush1.msra.mxu0 0.0
        %501 = vmatprep.subr.mxu0 0.0
        %502 = vmatpush1.msra.mxu0 0.0
        %503 = vmatprep.subr.mxu0 0.0
        %504 = vmatpush1.msra.mxu0 0.0
        %505 = vmatprep.subr.mxu0 0.0
        %506 = vmatpush1.msra.mxu0 0.0
        %507 = vmatprep.subr.mxu0 0.0
        %508 = vmatpush1.msra.mxu0 0.0
        %509 = vmatprep.subr.mxu0 0.0
        %510 = vmatpush1.msra.mxu0 0.0
        %511 = vmatprep.subr.mxu0 0.0
        %512 = vmatpush1.msra.mxu0 0.0
        %513 = vmatprep.subr.mxu0 0.0
        %514 = vmatpush1.msra.mxu0 0.0
        %515 = vmatprep.subr.mxu0 0.0
        %516 = vmatpush1.msra.mxu0 0.0
        %517 = vmatprep.subr.mxu0 0.0
        %518 = vmatpush1.msra.mxu0 0.0
        %519 = vmatprep.subr.mxu0 0.0
        %520 = vmatpush1.msra.mxu0 0.0
        %521 = vmatprep.subr.mxu0 0.0
        %522 = vmatpush1.msra.mxu0 0.0
        %523 = vmatprep.subr.mxu0 0.0
        %524 = vmatpush1.msra.mxu0 0.0
        %525 = vmatprep.subr.mxu0 0.0
        %526 = vmatpush1.msra.mxu0 0.0
        %527 = vmatprep.subr.mxu0 0.0
        %528 = vmatpush1.msra.mxu0 0.0
        %529 = vmatprep.subr.mxu0 0.0
        %530 = vmatpush1.msra.mxu0 0.0
        %531 = vmatprep.subr.mxu0 0.0
        %532 = vmatpush1.msra.mxu0 0.0
        %533 = vmatprep.subr.mxu0 0.0
        %534 = vmatpush1.msra.mxu0 0.0
        %535 = vmatprep.subr.mxu0 0.0
        %536 = vmatpush1.msra.mxu0 0.0
        %537 = vmatprep.subr.mxu0 0.0
        %538 = vmatpush1.msra.mxu0 0.0
        %539 = vmatprep.subr.mxu0 0.0
        %540 = vmatpush1.msra.mxu0 0.0
        %541 = vmatprep.subr.mxu0 0.0
        %542 = vmatpush1.msra.mxu0 0.0
        %543 = vmatprep.subr.mxu0 0.0
        %544 = vmatpush1.msra.mxu0 0.0
        %545 = vmatprep.subr.mxu0 0.0
        %546 = vmatpush1.msra.mxu0 0.0
        %547 = vmatprep.mubr.f32.mxu0 0.0
        %548 = vmatmul.mubr.f32.gmra.mrb[0].mxu0 %v481
        %v549 = vpop.f32.mrb[0].mxu0
        %v550 = vadd.f32 0.0, %v549
        %v551 = vpop.f32.mrb[0].mxu0
        %552 = vdwg.mxu0
        %553 = vst.msk [vmem:[%s367] sm:$0xff] %vm381, %v550
        %s554 = sand.u32 %s172, 1
        %s555 = scalar_lea.sflag [#allocation4], %s554
        %s556 = sand.u32 %s172, 1
        %s557 = smul.addr %s556, 8
        %s558 = scalar_lea.vmem [#allocation8], %s557
        %s559 = sand.u32 %s202, 1
        %s560 = scalar_lea.sflag [#allocation10], %s559
        %s561 = sand.u32 %s202, 1
        %s562 = smul.addr %s561, 8
        %s563 = scalar_lea.vmem [#allocation9], %s562
        // Predicated region
        $region49: #{tpu_custom_call.1} parent=35 // pred_check
          %p564 = pneg %p182
        $region50: #{tpu_custom_call.1} parent=35 // pred_check_branch
          %566 = sbr.rel (%p564) target = $region52
        $region51: #{tpu_custom_call.1} parent=35 // pred_region
          %s568 = ssub.s32 128, 128
          %569 = vsyncadd %s555, %s568
          %s570 = sadd.s32 %s36, %s35
          %s571 = smul.addr %s34, 4
          %s572 = sadd.s32 %s570, %s571
          %s573 = smul.addr %s572, 128
          %s574 = scalar_lea.hbm %s4, %s573
          %s576 = sshll.u32 %s558, 4
          %s577 = int_to_ptr.vmem [resolvable:$true] %s576
          %579 = dma.vmem_to_hbm [thread:$0]  %s577, 128, %s574, %s555
        $region52: #{tpu_custom_call.1} parent=35 // pred_fallthru
          _
        // Predicated region
        $region53: #{tpu_custom_call.1} parent=35 // pred_check
          %p580 = pneg %p212
        $region54: #{tpu_custom_call.1} parent=35 // pred_check_branch
          %582 = sbr.rel (%p580) target = $region56
        $region55: #{tpu_custom_call.1} parent=35 // pred_region
          %s584 = ssub.s32 128, 128
          %585 = vsyncadd %s560, %s584
          %s586 = sadd.s32 %s36, %s35
          %s587 = smul.addr %s34, 4
          %s588 = sadd.s32 %s586, %s587
          %s589 = smul.addr %s588, 128
          %s590 = scalar_lea.hbm %s5, %s589
          %s592 = sshll.u32 %s563, 4
          %s593 = int_to_ptr.vmem [resolvable:$true] %s592
          %595 = dma.vmem_to_hbm [thread:$0]  %s593, 128, %s590, %s560
        $region56: #{tpu_custom_call.1} parent=35 // pred_fallthru
          _
      $region36: #{tpu_custom_call.1} parent=5 // pred_fallthru
        _
      %p596 = scmp.le.s32.totalorder 2, %s24
      // Predicated region
      $region57: #{tpu_custom_call.1} parent=5 // pred_check
        %p597 = pneg %p596
      $region58: #{tpu_custom_call.1} parent=5 // pred_check_branch
        %599 = sbr.rel (%p597) target = $region60
      $region59: #{tpu_custom_call.1} parent=5 // pred_region
        %s600 = ssub.s32 %s24, 2
        // Predicated region
        $region61: #{tpu_custom_call.1} parent=59 // pred_check
          %p601 = pneg %p188
        $region62: #{tpu_custom_call.1} parent=59 // pred_check_branch
          %603 = sbr.rel (%p601) target = $region64
        $region63: #{tpu_custom_call.1} parent=59 // pred_region
          %s604 = sand.u32 %s173, 1
          %s605 = scalar_lea.sflag [#allocation4], %s604
          %s606 = sand.u32 %s173, 1
          %s607 = smul.addr %s606, 8
          %s608 = scalar_lea.vmem [#allocation8], %s607
          %609 = dma.done %s605, 128
        $region64: #{tpu_custom_call.1} parent=59 // pred_fallthru
          _
        // Predicated region
        $region65: #{tpu_custom_call.1} parent=59 // pred_check
          %p610 = pneg %p218
        $region66: #{tpu_custom_call.1} parent=59 // pred_check_branch
          %612 = sbr.rel (%p610) target = $region68
        $region67: #{tpu_custom_call.1} parent=59 // pred_region
          %s613 = sand.u32 %s203, 1
          %s614 = scalar_lea.sflag [#allocation10], %s613
          %s615 = sand.u32 %s203, 1
          %s616 = smul.addr %s615, 8
          %s617 = scalar_lea.vmem [#allocation9], %s616
          %618 = dma.done %s614, 128
        $region68: #{tpu_custom_call.1} parent=59 // pred_fallthru
          _
      $region60: #{tpu_custom_call.1} parent=5 // pred_fallthru
        _
    $region6: #{tpu_custom_call.1} parent=1 // loop_footer
      %s28 = sadd.s32 1, %s24
    $region7: #{tpu_custom_call.1} parent=1 // loop_footer_branch
      %23 = sbr.rel target = $region3
    $region8: #{tpu_custom_call.1} parent=1 // loop_exit
      _
    %619 = vsyncpa [#allocation3], 1
    %s620 = scalar_lea.sflag [#allocation3], 1
    %621 = vsyncpa %s620, 1
    %622 = vsyncpa [#allocation6], 1
    %s623 = scalar_lea.sflag [#allocation6], 1
    %624 = vsyncpa %s623, 1
    %625 = vsyncpa [#allocation4], 1
    %s626 = scalar_lea.sflag [#allocation4], 1
    %627 = vsyncpa %s626, 1
    %628 = vsyncpa [#allocation10], 1
    %s629 = scalar_lea.sflag [#allocation10], 1
    %630 = vsyncpa %s629, 1

</llo_original>
